<compile_context>
chip_gen: v7x
topology: tpu7x:2x2x1
jax: 0.10.0
libtpu: 0.0.40
codegen_flags: <defaults>
</compile_context>

<pallas_src>
import functools

import jax
import jax.numpy as jnp
from jax.experimental import pallas as pl
from jax.experimental.pallas import tpu as pltpu


def _round_up(x, m):
    return ((x + m - 1) // m) * m


def _tucker_kernel(e1_ref, r_ref, e3_ref, w_ref,
                   bn0s_ref, bn0b_ref, bn1s_ref, bn1b_ref,
                   out_ref, outer_ref, *, rank):
    # bn0 (eval); input_dropout is identity in eval.                [R, TB] f32
    x = e1_ref[...] * bn0s_ref[...] + bn0b_ref[...]

    # outer[i*R + k, b] = r[i, b] * x[k, b]  -> VMEM scratch (matmul dtype).
    # Each iteration writes one sublane-aligned [R, TB] slab; r_i broadcasting
    # is a [1, TB] -> [R, TB] sublane broadcast (no lane shuffles / no XLU).
    def _fill(i, carry):
        r_i = r_ref[pl.ds(i, 1), :]                              # [1, TB]
        outer_ref[pl.ds(i * rank, rank), :] = (x * r_i).astype(outer_ref.dtype)
        return carry

    jax.lax.fori_loop(0, rank, _fill, 0)

    # Fused Tucker contraction on the MXU (w_ref[j, i*R+k] = W[i, k, j]):
    #   x1[j, b] = sum_{i,k} W[i,k,j] * r[i,b] * x[k,b]
    # bf16 (or f32) operands, f32 accumulation.
    x1 = jnp.dot(w_ref[...], outer_ref[...],
                 preferred_element_type=jnp.float32)             # [R, TB] f32

    # bn1 (eval); hidden_dropout{1,2} are identity in eval.
    x1 = x1 * bn1s_ref[...] + bn1b_ref[...]

    # Row-wise dot with e3 along the feature (sublane) axis, sigmoid, and a
    # lane-dense [1, TB] store (batch on the lane axis).
    score = jnp.sum(x1 * e3_ref[...], axis=0, keepdims=True)     # [1, TB]
    out_ref[...] = jax.nn.sigmoid(score)


def tucker_forward(idxs, params, *, block_b=256, matmul_dtype=jnp.bfloat16,
                   eps=1e-5):
    """Pallas TuckER eval-mode forward. idxs: int32 [B, 3]; returns f32 [B]."""
    rank = params["emb0"].shape[1]
    B = idxs.shape[0]

    # ---- glue (plain JAX): gathers, transpose to [R, B], BN folding --------
    # NOTE: at very large batch the three gathers could be fused into the
    # kernel via PrefetchScalarGridSpec row-gather index_maps; kept outside
    # here since the gathered activations are small relative to W.
    e1 = jnp.take(params["emb0"], idxs[:, 0], axis=0).astype(jnp.float32).T
    r = jnp.take(params["emb1"], idxs[:, 1], axis=0).astype(jnp.float32).T
    e3 = jnp.take(params["emb2"], idxs[:, 2], axis=0).astype(jnp.float32).T

    bn0_scale = params["bn0_gamma"] / jnp.sqrt(params["bn0_var"] + eps)
    bn0_shift = params["bn0_beta"] - params["bn0_mean"] * bn0_scale
    bn1_scale = params["bn1_gamma"] / jnp.sqrt(params["bn1_var"] + eps)
    bn1_shift = params["bn1_beta"] - params["bn1_mean"] * bn1_scale

    # Core tensor in "j, (i*R + k)" order so the kernel matmul is
    # [R, R^2] x [R^2, TB].  (In a serving path, precompute/cache this permute
    # and the bf16 cast once instead of per call.)
    w_jik = jnp.transpose(params["W"], (2, 0, 1)).reshape(rank, rank * rank)
    w_jik = w_jik.astype(matmul_dtype)

    # Batch tile = multiple of 128 lanes; pad batch up to a whole tile.
    tb = max(128, min(_round_up(block_b, 128), _round_up(B, 128)))
    b_pad = _round_up(B, tb)
    pad = b_pad - B
    if pad:
        e1 = jnp.pad(e1, ((0, 0), (0, pad)))
        r = jnp.pad(r, ((0, 0), (0, pad)))
        e3 = jnp.pad(e3, ((0, 0), (0, pad)))

    grid = (b_pad // tb,)
    act_spec = pl.BlockSpec((rank, tb), lambda i: (0, i))

    def const_spec(shape):
        return pl.BlockSpec(shape, lambda i: (0, 0))

    flops = 2 * b_pad * rank ** 3
    bytes_accessed = (3 * rank * b_pad * 4
                      + int(w_jik.size) * w_jik.dtype.itemsize
                      + 4 * rank * 4 + b_pad * 4)

    out = pl.pallas_call(
        functools.partial(_tucker_kernel, rank=rank),
        out_shape=jax.ShapeDtypeStruct((1, b_pad), jnp.float32),
        grid_spec=pltpu.PrefetchScalarGridSpec(
            num_scalar_prefetch=0,
            grid=grid,
            in_specs=[
                act_spec,                                 # e1  [R, B_pad]
                act_spec,                                 # r   [R, B_pad]
                act_spec,                                 # e3  [R, B_pad]
                const_spec((rank, rank * rank)),          # W   (stays resident)
                const_spec((rank, 1)),                    # bn0 scale
                const_spec((rank, 1)),                    # bn0 shift
                const_spec((rank, 1)),                    # bn1 scale
                const_spec((rank, 1)),                    # bn1 shift
            ],
            out_specs=pl.BlockSpec((1, tb), lambda i: (0, i)),
            scratch_shapes=[pltpu.VMEM((rank * rank, tb), matmul_dtype)],
        ),
        compiler_params=pltpu.CompilerParams(
            dimension_semantics=("parallel",),            # megacore on v7x
            vmem_limit_bytes=48 * 1024 * 1024,
        ),
        cost_estimate=pl.CostEstimate(flops=flops, transcendentals=b_pad,
                                      bytes_accessed=bytes_accessed),
    )(
        e1, r, e3, w_jik,
        bn0_scale.reshape(rank, 1).astype(jnp.float32),
        bn0_shift.reshape(rank, 1).astype(jnp.float32),
        bn1_scale.reshape(rank, 1).astype(jnp.float32),
        bn1_shift.reshape(rank, 1).astype(jnp.float32),
    )
    return out[0, :B]


def tucker_reference(idxs, params, *, matmul_dtype=jnp.float32, eps=1e-5):
    """Pure-JAX TuckER eval-mode forward (dropout = identity, eval BatchNorm
    folded to scale/shift).  `matmul_dtype` mirrors the kernel's
    mixed-precision MXU path (bf16 operands, f32 accumulation); with float32 it
    is the plain eval-mode forward of the PyTorch module."""
    rank = params["emb0"].shape[1]
    e1 = jnp.take(params["emb0"], idxs[:, 0], axis=0)
    r = jnp.take(params["emb1"], idxs[:, 1], axis=0)
    e3 = jnp.take(params["emb2"], idxs[:, 2], axis=0)

    bn0_scale = params["bn0_gamma"] / jnp.sqrt(params["bn0_var"] + eps)
    bn0_shift = params["bn0_beta"] - params["bn0_mean"] * bn0_scale
    bn1_scale = params["bn1_gamma"] / jnp.sqrt(params["bn1_var"] + eps)
    bn1_shift = params["bn1_beta"] - params["bn1_mean"] * bn1_scale

    x = e1 * bn0_scale + bn0_shift                                # bn0 (eval)
    # x1[b, j] = sum_{i,k} r[b,i] * x[b,k] * W[i,k,j]
    #          == torch: bmm(x.view(B,1,R), (r @ W.view(R,-1)).view(B,R,R))
    outer = (r[:, :, None] * x[:, None, :]).reshape(-1, rank * rank)
    w2 = params["W"].reshape(rank * rank, rank)                   # w2[i*R+k, j]
    x1 = jnp.dot(outer.astype(matmul_dtype), w2.astype(matmul_dtype),
                 preferred_element_type=jnp.float32)
    x1 = x1 * bn1_scale + bn1_shift                               # bn1 (eval)
    score = jnp.sum(x1 * e3, axis=-1)
    return jax.nn.sigmoid(score)


def init_params(key, sizes, rank):
    k0, k1, k2, kw = jax.random.split(key, 4)
    params = {
        # nn.Embedding default init: N(0, 1)
        "emb0": jax.random.normal(k0, (sizes[0], rank), jnp.float32),
        "emb1": jax.random.normal(k1, (sizes[1], rank), jnp.float32),
        "emb2": jax.random.normal(k2, (sizes[2], rank), jnp.float32),
        # core tensor: torch.randn([rank, rank, rank])
        "W": jax.random.normal(kw, (rank, rank, rank), jnp.float32),
        # BatchNorm1d defaults (eval mode)
        "bn0_gamma": jnp.ones((rank,), jnp.float32),
        "bn0_beta": jnp.zeros((rank,), jnp.float32),
        "bn0_mean": jnp.zeros((rank,), jnp.float32),
        "bn0_var": jnp.ones((rank,), jnp.float32),
        "bn1_gamma": jnp.ones((rank,), jnp.float32),
        "bn1_beta": jnp.zeros((rank,), jnp.float32),
        "bn1_mean": jnp.zeros((rank,), jnp.float32),
        "bn1_var": jnp.ones((rank,), jnp.float32),
    }
    return params


if __name__ == "__main__":
    key = jax.random.PRNGKey(0)
    sizes = (50, 20, 50)     # (n_subjects, n_relations, n_objects)
    rank = 32
    batch = 256              # 2 batch tiles of 128 lanes -> grid = (2,)

    pkey, ikey = jax.random.split(key)
    params = init_params(pkey, sizes, rank)

    ks, kr, ko = jax.random.split(ikey, 3)
    idxs = jnp.stack(
        [
            jax.random.randint(ks, (batch,), 0, sizes[0]),
            jax.random.randint(kr, (batch,), 0, sizes[1]),
            jax.random.randint(ko, (batch,), 0, sizes[2]),
        ],
        axis=1,
    ).astype(jnp.int32)                                           # [B, 3]

    # 1) f32 MXU path vs the plain f32 reference (tight check).
    pred_f32 = jax.block_until_ready(
        tucker_forward(idxs, params, block_b=128, matmul_dtype=jnp.float32))
    ref_f32 = jax.block_until_ready(tucker_reference(idxs, params))
    assert pred_f32.shape == (batch,)
    assert jnp.allclose(pred_f32, ref_f32, rtol=5e-3, atol=2e-3), (
        float(jnp.max(jnp.abs(pred_f32 - ref_f32))))

    # 2) Default bf16-operand / f32-accumulation path vs the matched-precision
    #    reference (bf16 MXU operands need looser tolerance than pure f32).
    pred_bf16 = jax.block_until_ready(
        tucker_forward(idxs, params, block_b=128))
    ref_bf16 = jax.block_until_ready(
        tucker_reference(idxs, params, matmul_dtype=jnp.bfloat16))
    assert pred_bf16.shape == (batch,)
    assert jnp.allclose(pred_bf16, ref_bf16, rtol=1e-2, atol=5e-3), (
        float(jnp.max(jnp.abs(pred_bf16 - ref_bf16))))

    print("KERNEL_OK")
</pallas_src>

<mosaic_0001>
module attributes {stable_mosaic.version = 11 : i64} {
  func.func @_tucker_kernel(%arg0: i32, %arg1: memref<32x128xf32, #tpu.memory_space<vmem>>, %arg2: memref<32x128xf32, #tpu.memory_space<vmem>>, %arg3: memref<32x128xf32, #tpu.memory_space<vmem>>, %arg4: memref<32x1024xf32, #tpu.memory_space<vmem>>, %arg5: memref<32x1xf32, #tpu.memory_space<vmem>>, %arg6: memref<32x1xf32, #tpu.memory_space<vmem>>, %arg7: memref<32x1xf32, #tpu.memory_space<vmem>>, %arg8: memref<32x1xf32, #tpu.memory_space<vmem>>, %arg9: memref<1x128xf32, #tpu.memory_space<vmem>>, %arg10: memref<1024x128xf32, #tpu.memory_space<vmem>>) attributes {dimension_semantics = [#tpu.dimension_semantics<parallel>], iteration_bounds = array<i64: 2>, scalar_prefetch = 0 : i64, scratch_operands = 1 : i64, tpu.core_type = #tpu.core_type<tc>, window_params = [{transform_indices = @transform_0, window_bounds = array<i64: 32, 128>}, {transform_indices = @transform_1, window_bounds = array<i64: 32, 128>}, {transform_indices = @transform_2, window_bounds = array<i64: 32, 128>}, {pipeline_mode = #tpu.pipeline_mode<synchronous>, transform_indices = @transform_3, window_bounds = array<i64: 32, 1024>}, {pipeline_mode = #tpu.pipeline_mode<synchronous>, transform_indices = @transform_4, window_bounds = array<i64: 32, 1>}, {pipeline_mode = #tpu.pipeline_mode<synchronous>, transform_indices = @transform_5, window_bounds = array<i64: 32, 1>}, {pipeline_mode = #tpu.pipeline_mode<synchronous>, transform_indices = @transform_6, window_bounds = array<i64: 32, 1>}, {pipeline_mode = #tpu.pipeline_mode<synchronous>, transform_indices = @transform_7, window_bounds = array<i64: 32, 1>}, {transform_indices = @transform_8, window_bounds = array<i64: 1, 128>}]} {
    %c0 = arith.constant 0 : index
    %c0_0 = arith.constant 0 : index
    %0 = vector.load %arg1[%c0, %c0_0] : memref<32x128xf32, #tpu.memory_space<vmem>>, vector<32x128xf32>
    %c0_1 = arith.constant 0 : index
    %c0_2 = arith.constant 0 : index
    %1 = vector.load %arg5[%c0_1, %c0_2] : memref<32x1xf32, #tpu.memory_space<vmem>>, vector<32x1xf32>
    %2 = vector.broadcast %1 : vector<32x1xf32> to vector<32x128xf32>
    %3 = arith.mulf %0, %2 : vector<32x128xf32>
    %c0_3 = arith.constant 0 : index
    %c0_4 = arith.constant 0 : index
    %4 = vector.load %arg6[%c0_3, %c0_4] : memref<32x1xf32, #tpu.memory_space<vmem>>, vector<32x1xf32>
    %5 = vector.broadcast %4 : vector<32x1xf32> to vector<32x128xf32>
    %6 = arith.addf %3, %5 : vector<32x128xf32>
    %c0_i32 = arith.constant 0 : i32
    %c32_i32 = arith.constant 32 : i32
    %7 = arith.addi %c0_i32, %c32_i32 : i32
    %c1_i32 = arith.constant 1 : i32
    scf.for %arg11 = %c0_i32 to %7 step %c1_i32  : i32 {
      %27 = arith.index_cast %arg11 : i32 to index
      %c0_20 = arith.constant 0 : index
      %28 = vector.load %arg2[%27, %c0_20] : memref<32x128xf32, #tpu.memory_space<vmem>>, vector<1x128xf32>
      %29 = vector.broadcast %28 : vector<1x128xf32> to vector<32x128xf32>
      %30 = arith.mulf %6, %29 : vector<32x128xf32>
      %c32_i32_21 = arith.constant 32 : i32
      %31 = arith.muli %arg11, %c32_i32_21 : i32
      %32 = arith.index_cast %31 : i32 to index
      %c0_22 = arith.constant 0 : index
      %33 = vector.load %arg10[%32, %c0_22] : memref<1024x128xf32, #tpu.memory_space<vmem>>, vector<32x128xf32>
      tpu.vector_store %arg10[%32, %c0_22], %30 {strides = array<i32>} : memref<1024x128xf32, #tpu.memory_space<vmem>>, vector<32x128xf32>,
    }
    %c32_i32_5 = arith.constant 32 : i32
    %c0_6 = arith.constant 0 : index
    %c0_7 = arith.constant 0 : index
    %8 = vector.load %arg4[%c0_6, %c0_7] : memref<32x1024xf32, #tpu.memory_space<vmem>>, vector<32x1024xf32>
    %c0_8 = arith.constant 0 : index
    %c0_9 = arith.constant 0 : index
    %9 = vector.load %arg10[%c0_8, %c0_9] : memref<1024x128xf32, #tpu.memory_space<vmem>>, vector<1024x128xf32>
    %cst = arith.constant dense<0.000000e+00> : vector<32x128xf32>
    %10 = tpu.matmul %8, %9, %cst {dimension_numbers = #tpu.dot_dimension_numbers<[1], [0], [0], [1], [0, 0, 1, 1], [], []>} : vector<32x1024xf32>, vector<1024x128xf32>, vector<32x128xf32> -> vector<32x128xf32>
    %c0_10 = arith.constant 0 : index
    %c0_11 = arith.constant 0 : index
    %11 = vector.load %arg7[%c0_10, %c0_11] : memref<32x1xf32, #tpu.memory_space<vmem>>, vector<32x1xf32>
    %12 = vector.broadcast %11 : vector<32x1xf32> to vector<32x128xf32>
    %13 = arith.mulf %10, %12 : vector<32x128xf32>
    %c0_12 = arith.constant 0 : index
    %c0_13 = arith.constant 0 : index
    %14 = vector.load %arg8[%c0_12, %c0_13] : memref<32x1xf32, #tpu.memory_space<vmem>>, vector<32x1xf32>
    %15 = vector.broadcast %14 : vector<32x1xf32> to vector<32x128xf32>
    %16 = arith.addf %13, %15 : vector<32x128xf32>
    %c0_14 = arith.constant 0 : index
    %c0_15 = arith.constant 0 : index
    %17 = vector.load %arg3[%c0_14, %c0_15] : memref<32x128xf32, #tpu.memory_space<vmem>>, vector<32x128xf32>
    %18 = arith.mulf %16, %17 : vector<32x128xf32>
    %cst_16 = arith.constant dense<0.000000e+00> : vector<128xf32>
    %19 = vector.multi_reduction <add>, %18, %cst_16 [0] : vector<32x128xf32> to vector<128xf32>
    %20 = vector.shape_cast %19 : vector<128xf32> to vector<1x128xf32>
    %21 = arith.negf %20 : vector<1x128xf32>
    %22 = math.exp %21 : vector<1x128xf32>
    %cst_17 = arith.constant 1.000000e+00 : f32
    %23 = vector.broadcast %cst_17 : f32 to vector<1x128xf32>
    %24 = arith.addf %23, %22 : vector<1x128xf32>
    %25 = arith.divf %23, %24 : vector<1x128xf32>
    %c0_18 = arith.constant 0 : index
    %c0_19 = arith.constant 0 : index
    %26 = vector.load %arg9[%c0_18, %c0_19] : memref<1x128xf32, #tpu.memory_space<vmem>>, vector<1x128xf32>
    tpu.vector_store %arg9[%c0_18, %c0_19], %25 {strides = array<i32>} : memref<1x128xf32, #tpu.memory_space<vmem>>, vector<1x128xf32>,
    return
  }
  func.func @transform_0(%arg0: i32) -> (i32, i32) {
    %c0_i32 = arith.constant 0 : i32
    %c0_i32_0 = arith.constant 0 : i32
    return %c0_i32, %arg0 : i32, i32
  }
  func.func @transform_1(%arg0: i32) -> (i32, i32) {
    %c0_i32 = arith.constant 0 : i32
    %c0_i32_0 = arith.constant 0 : i32
    return %c0_i32, %arg0 : i32, i32
  }
  func.func @transform_2(%arg0: i32) -> (i32, i32) {
    %c0_i32 = arith.constant 0 : i32
    %c0_i32_0 = arith.constant 0 : i32
    return %c0_i32, %arg0 : i32, i32
  }
  func.func @transform_3(%arg0: i32) -> (i32, i32) {
    %c0_i32 = arith.constant 0 : i32
    %c0_i32_0 = arith.constant 0 : i32
    %c0_i32_1 = arith.constant 0 : i32
    return %c0_i32, %c0_i32_0 : i32, i32
  }
  func.func @transform_4(%arg0: i32) -> (i32, i32) {
    %c0_i32 = arith.constant 0 : i32
    %c0_i32_0 = arith.constant 0 : i32
    %c0_i32_1 = arith.constant 0 : i32
    return %c0_i32, %c0_i32_0 : i32, i32
  }
  func.func @transform_5(%arg0: i32) -> (i32, i32) {
    %c0_i32 = arith.constant 0 : i32
    %c0_i32_0 = arith.constant 0 : i32
    %c0_i32_1 = arith.constant 0 : i32
    return %c0_i32, %c0_i32_0 : i32, i32
  }
  func.func @transform_6(%arg0: i32) -> (i32, i32) {
    %c0_i32 = arith.constant 0 : i32
    %c0_i32_0 = arith.constant 0 : i32
    %c0_i32_1 = arith.constant 0 : i32
    return %c0_i32, %c0_i32_0 : i32, i32
  }
  func.func @transform_7(%arg0: i32) -> (i32, i32) {
    %c0_i32 = arith.constant 0 : i32
    %c0_i32_0 = arith.constant 0 : i32
    %c0_i32_1 = arith.constant 0 : i32
    return %c0_i32, %c0_i32_0 : i32, i32
  }
  func.func @transform_8(%arg0: i32) -> (i32, i32) {
    %c0_i32 = arith.constant 0 : i32
    %c0_i32_0 = arith.constant 0 : i32
    return %c0_i32, %arg0 : i32, i32
  }
}

</mosaic_0001>

<llo_original>
// kernel: tpu_custom_call.1
$region0: #{tpu_custom_call.1}
  #allocation0 [shape = 'u32[]', space=smem, size = 0x4, offset = 0x4, fixed_abs, tag = 'smem constant byte address 0x4 - core index']
  #allocation1 [shape = 'u32[144,128]{1,0:T(1,128)}', space=vmem, size = 0x12000, scoped, tag = 'internal scratch']
  #allocation2 [shape = 'f32[1024,128]{1,0:T(8,128)}', space=vmem, size = 0x80000, scoped, tag = 'scratch operand']
  %s0 = inlined_call_operand.vmem [shape: f32[32,256], index: 0, kind: input, shape index: {}]
  %s1 = inlined_call_operand.vmem [shape: f32[32,256], index: 1, kind: input, shape index: {}]
  %s2 = inlined_call_operand.hbm [shape: f32[32,256], index: 2, kind: input, shape index: {}]
  %s3 = inlined_call_operand.hbm [shape: f32[32,1024], index: 3, kind: input, shape index: {}]
  %s4 = inlined_call_operand.vmem [shape: f32[32,1], index: 4, kind: input, shape index: {}]
  %s5 = inlined_call_operand.vmem [shape: f32[32,1], index: 5, kind: input, shape index: {}]
  %s6 = inlined_call_operand.vmem [shape: f32[32,1], index: 6, kind: input, shape index: {}]
  %s7 = inlined_call_operand.vmem [shape: f32[32,1], index: 7, kind: input, shape index: {}]
  %s8 = inlined_call_operand.hbm [shape: f32[1,256], index: 8, kind: output, shape index: {}]
  %s9 = sld [smem:[#allocation0]]
  $region156: #{tpu_custom_call.1} parent=0
    _
  %s11 = ssub.s32 1, %s9
  %s12 = scalar_select 0, %s11, %s9
  $region1: #{tpu_custom_call.1} parent=0
    #allocation3 [shape = 'u8[32768]{0}', space=vmem, size = 0x8000, scoped, tag = 'input window, operand 0']
    #allocation4 [shape = 'u8[32768]{0}', space=vmem, size = 0x8000, scoped, tag = 'input window, operand 1']
    #allocation5 [shape = 'u8[32768]{0}', space=vmem, size = 0x8000, scoped, tag = 'input window, operand 2']
    #allocation6 [shape = 's32[2]{0}', space=sflag, size = 0x8, scoped, tag = 'scoped memory for tpu_custom_call.1']
    #allocation7 [shape = 's32[2]{0}', space=sflag, size = 0x8, scoped, tag = 'scoped memory for tpu_custom_call.1']
    #allocation8 [shape = 'u8[131072]{0}', space=vmem, size = 0x20000, scoped, tag = 'input window, operand 3, single buffered']
    #allocation9 [shape = 's32[1]{0}', space=sflag, size = 0x4, scoped, tag = 'scoped memory for tpu_custom_call.1']
    #allocation10 [shape = 'u8[1024]{0}', space=vmem, size = 0x400, scoped, tag = 'output window, operand 0']
    %13 = vsyncpa [#allocation6], 0
    %s14 = scalar_lea.sflag [#allocation6], 1
    %15 = vsyncpa %s14, 0
    %16 = vsyncpa [#allocation9], 0
    %17 = vsyncpa [#allocation7], 0
    %s18 = scalar_lea.sflag [#allocation7], 1
    %19 = vsyncpa %s18, 0
    loop: start=0, step=1, limit=4
    $region2: #{tpu_custom_call.1} parent=1 // loop_pre_header
      _
    $region3: #{tpu_custom_call.1} parent=1 // loop_header
      %s21 = sphi 0, %s25
      %p22 = scmp.ge.s32.totalorder %s21, 4
      %s31 = sphi 0, %s33
      %s34 = sphi 0, %s31
      %s35 = sphi 0, %s34
      %s51 = sphi 0, %s35
      %s57 = sphi 0, %s59
      %s60 = sphi 0, %s57
      %s61 = sphi 0, %s60
      %s77 = sphi 0, %s61
      %s83 = sphi 0, %s85
      %s86 = sphi 0, %s83
      %s87 = sphi 0, %s86
      %s103 = sphi 0, %s87
      %s107 = sphi 0, %s107
      %s109 = sphi 0, %s107
      %s110 = sphi 0, %s109
      %s124 = sphi 0, %s110
      %s128 = sphi 0, %s128
      %s130 = sphi 0, %s128
      %s131 = sphi 0, %s130
      %s145 = sphi 0, %s131
      %s149 = sphi 0, %s149
      %s151 = sphi 0, %s149
      %s152 = sphi 0, %s151
      %s166 = sphi 0, %s152
      %s170 = sphi 0, %s170
      %s172 = sphi 0, %s170
      %s173 = sphi 0, %s172
      %s187 = sphi 0, %s173
      %s191 = sphi 0, %s191
      %s193 = sphi 0, %s191
      %s194 = sphi 0, %s193
      %s208 = sphi 0, %s194
      %s214 = sphi 0, %s216
      %s217 = sphi 0, %s214
      %s218 = sphi 0, %s217
      %s234 = sphi 0, %s218
    $region4: #{tpu_custom_call.1} parent=1 // loop_header_branch
      %24 = sbr.rel (%p22) target = $region8
    $region5: #{tpu_custom_call.1} parent=1 // loop_body
      %s26 = ssub.s32 %s21, 1
      %s27 = ssub.s32 %s21, 2
      %s28 = sadd.s32 %s21, 1
      %s29 = ssub.s32 %s21, %s28
      %p30 = scmp.eq.s32.totalorder %s29, 0
      %s32 = sadd.s32 %s31, 1
      %s33 = scalar_select %p30, %s31, %s32
      %p36 = pneg %p30
      %p37 = scmp.eq.s32.totalorder %s21, 1
      %p38 = por %p36, %p37
      %p39 = scmp.ne.s32.totalorder %s31, %s34
      %p40 = scmp.eq.s32.totalorder %s21, 0
      %p41 = por %p39, %p40
      %p42 = scmp.ne.s32.totalorder %s31, %s34
      %p43 = scmp.eq.s32.totalorder %s26, 1
      %p44 = por %p42, %p43
      %p45 = scmp.ne.s32.totalorder %s34, %s35
      %p46 = scmp.eq.s32.totalorder %s26, 0
      %p47 = por %p45, %p46
      %p48 = scmp.ne.s32.totalorder %s34, %s35
      %p49 = scmp.eq.s32.totalorder %s27, 1
      %p50 = por %p48, %p49
      %p52 = scmp.ne.s32.totalorder %s35, %s51
      %p53 = scmp.eq.s32.totalorder %s27, 0
      %p54 = por %p52, %p53
      %s55 = ssub.s32 %s21, %s28
      %p56 = scmp.eq.s32.totalorder %s55, 0
      %s58 = sadd.s32 %s57, 1
      %s59 = scalar_select %p56, %s57, %s58
      %p62 = pneg %p56
      %p63 = scmp.eq.s32.totalorder %s21, 1
      %p64 = por %p62, %p63
      %p65 = scmp.ne.s32.totalorder %s57, %s60
      %p66 = scmp.eq.s32.totalorder %s21, 0
      %p67 = por %p65, %p66
      %p68 = scmp.ne.s32.totalorder %s57, %s60
      %p69 = scmp.eq.s32.totalorder %s26, 1
      %p70 = por %p68, %p69
      %p71 = scmp.ne.s32.totalorder %s60, %s61
      %p72 = scmp.eq.s32.totalorder %s26, 0
      %p73 = por %p71, %p72
      %p74 = scmp.ne.s32.totalorder %s60, %s61
      %p75 = scmp.eq.s32.totalorder %s27, 1
      %p76 = por %p74, %p75
      %p78 = scmp.ne.s32.totalorder %s61, %s77
      %p79 = scmp.eq.s32.totalorder %s27, 0
      %p80 = por %p78, %p79
      %s81 = ssub.s32 %s21, %s28
      %p82 = scmp.eq.s32.totalorder %s81, 0
      %s84 = sadd.s32 %s83, 1
      %s85 = scalar_select %p82, %s83, %s84
      %p88 = pneg %p82
      %p89 = scmp.eq.s32.totalorder %s21, 1
      %p90 = por %p88, %p89
      %p91 = scmp.ne.s32.totalorder %s83, %s86
      %p92 = scmp.eq.s32.totalorder %s21, 0
      %p93 = por %p91, %p92
      %p94 = scmp.ne.s32.totalorder %s83, %s86
      %p95 = scmp.eq.s32.totalorder %s26, 1
      %p96 = por %p94, %p95
      %p97 = scmp.ne.s32.totalorder %s86, %s87
      %p98 = scmp.eq.s32.totalorder %s26, 0
      %p99 = por %p97, %p98
      %p100 = scmp.ne.s32.totalorder %s86, %s87
      %p101 = scmp.eq.s32.totalorder %s27, 1
      %p102 = por %p100, %p101
      %p104 = scmp.ne.s32.totalorder %s87, %s103
      %p105 = scmp.eq.s32.totalorder %s27, 0
      %p106 = por %p104, %p105
      %s108 = sadd.s32 %s107, 1
      %p111 = scmp.eq.s32.totalorder %s21, 1
      %p112 = scmp.ne.s32.totalorder %s107, %s109
      %p113 = scmp.eq.s32.totalorder %s21, 0
      %p114 = por %p112, %p113
      %p115 = scmp.ne.s32.totalorder %s107, %s109
      %p116 = scmp.eq.s32.totalorder %s26, 1
      %p117 = por %p115, %p116
      %p118 = scmp.ne.s32.totalorder %s109, %s110
      %p119 = scmp.eq.s32.totalorder %s26, 0
      %p120 = por %p118, %p119
      %p121 = scmp.ne.s32.totalorder %s109, %s110
      %p122 = scmp.eq.s32.totalorder %s27, 1
      %p123 = por %p121, %p122
      %p125 = scmp.ne.s32.totalorder %s110, %s124
      %p126 = scmp.eq.s32.totalorder %s27, 0
      %p127 = por %p125, %p126
      %s129 = sadd.s32 %s128, 1
      %p132 = scmp.eq.s32.totalorder %s21, 1
      %p133 = scmp.ne.s32.totalorder %s128, %s130
      %p134 = scmp.eq.s32.totalorder %s21, 0
      %p135 = por %p133, %p134
      %p136 = scmp.ne.s32.totalorder %s128, %s130
      %p137 = scmp.eq.s32.totalorder %s26, 1
      %p138 = por %p136, %p137
      %p139 = scmp.ne.s32.totalorder %s130, %s131
      %p140 = scmp.eq.s32.totalorder %s26, 0
      %p141 = por %p139, %p140
      %p142 = scmp.ne.s32.totalorder %s130, %s131
      %p143 = scmp.eq.s32.totalorder %s27, 1
      %p144 = por %p142, %p143
      %p146 = scmp.ne.s32.totalorder %s131, %s145
      %p147 = scmp.eq.s32.totalorder %s27, 0
      %p148 = por %p146, %p147
      %s150 = sadd.s32 %s149, 1
      %p153 = scmp.eq.s32.totalorder %s21, 1
      %p154 = scmp.ne.s32.totalorder %s149, %s151
      %p155 = scmp.eq.s32.totalorder %s21, 0
      %p156 = por %p154, %p155
      %p157 = scmp.ne.s32.totalorder %s149, %s151
      %p158 = scmp.eq.s32.totalorder %s26, 1
      %p159 = por %p157, %p158
      %p160 = scmp.ne.s32.totalorder %s151, %s152
      %p161 = scmp.eq.s32.totalorder %s26, 0
      %p162 = por %p160, %p161
      %p163 = scmp.ne.s32.totalorder %s151, %s152
      %p164 = scmp.eq.s32.totalorder %s27, 1
      %p165 = por %p163, %p164
      %p167 = scmp.ne.s32.totalorder %s152, %s166
      %p168 = scmp.eq.s32.totalorder %s27, 0
      %p169 = por %p167, %p168
      %s171 = sadd.s32 %s170, 1
      %p174 = scmp.eq.s32.totalorder %s21, 1
      %p175 = scmp.ne.s32.totalorder %s170, %s172
      %p176 = scmp.eq.s32.totalorder %s21, 0
      %p177 = por %p175, %p176
      %p178 = scmp.ne.s32.totalorder %s170, %s172
      %p179 = scmp.eq.s32.totalorder %s26, 1
      %p180 = por %p178, %p179
      %p181 = scmp.ne.s32.totalorder %s172, %s173
      %p182 = scmp.eq.s32.totalorder %s26, 0
      %p183 = por %p181, %p182
      %p184 = scmp.ne.s32.totalorder %s172, %s173
      %p185 = scmp.eq.s32.totalorder %s27, 1
      %p186 = por %p184, %p185
      %p188 = scmp.ne.s32.totalorder %s173, %s187
      %p189 = scmp.eq.s32.totalorder %s27, 0
      %p190 = por %p188, %p189
      %s192 = sadd.s32 %s191, 1
      %p195 = scmp.eq.s32.totalorder %s21, 1
      %p196 = scmp.ne.s32.totalorder %s191, %s193
      %p197 = scmp.eq.s32.totalorder %s21, 0
      %p198 = por %p196, %p197
      %p199 = scmp.ne.s32.totalorder %s191, %s193
      %p200 = scmp.eq.s32.totalorder %s26, 1
      %p201 = por %p199, %p200
      %p202 = scmp.ne.s32.totalorder %s193, %s194
      %p203 = scmp.eq.s32.totalorder %s26, 0
      %p204 = por %p202, %p203
      %p205 = scmp.ne.s32.totalorder %s193, %s194
      %p206 = scmp.eq.s32.totalorder %s27, 1
      %p207 = por %p205, %p206
      %p209 = scmp.ne.s32.totalorder %s194, %s208
      %p210 = scmp.eq.s32.totalorder %s27, 0
      %p211 = por %p209, %p210
      %s212 = ssub.s32 %s21, %s28
      %p213 = scmp.eq.s32.totalorder %s212, 0
      %s215 = sadd.s32 %s214, 1
      %s216 = scalar_select %p213, %s214, %s215
      %p219 = pneg %p213
      %p220 = scmp.eq.s32.totalorder %s21, 1
      %p221 = por %p219, %p220
      %p222 = scmp.ne.s32.totalorder %s214, %s217
      %p223 = scmp.eq.s32.totalorder %s21, 0
      %p224 = por %p222, %p223
      %p225 = scmp.ne.s32.totalorder %s214, %s217
      %p226 = scmp.eq.s32.totalorder %s26, 1
      %p227 = por %p225, %p226
      %p228 = scmp.ne.s32.totalorder %s217, %s218
      %p229 = scmp.eq.s32.totalorder %s26, 0
      %p230 = por %p228, %p229
      %p231 = scmp.ne.s32.totalorder %s217, %s218
      %p232 = scmp.eq.s32.totalorder %s27, 1
      %p233 = por %p231, %p232
      %p235 = scmp.ne.s32.totalorder %s218, %s234
      %p236 = scmp.eq.s32.totalorder %s27, 0
      %p237 = por %p235, %p236
      %p238 = scmp.le.s32.totalorder 1, %s21
      %p239 = scmp.lt.s32.totalorder %s21, 3
      %p240 = pnand %p238, %p239
      %p241 = pneg %p240
      // Predicated region
      $region9: #{tpu_custom_call.1} parent=5 // pred_check
        _
      $region10: #{tpu_custom_call.1} parent=5 // pred_check_branch
        %243 = sbr.rel (%p240) target = $region12
      $region11: #{tpu_custom_call.1} parent=5 // pred_region
        %s244 = ssub.s32 %s21, 1
        // Predicated region
        $region13: #{tpu_custom_call.1} parent=11 // pred_check
          %p245 = pneg %p120
        $region14: #{tpu_custom_call.1} parent=11 // pred_check_branch
          %247 = sbr.rel (%p245) target = $region16
        $region15: #{tpu_custom_call.1} parent=11 // pred_region
          %s249 = ssub.s32 4096, 4096
          %250 = vsyncadd [#allocation9], %s249
          %s251 = sshll.u32 [#allocation8], 4
          %s252 = int_to_ptr.vmem [resolvable:$true] %s251
          %257 = dma.hbm_to_vmem [thread:$0]  %s3, 4096, %s252, [#allocation9], 1024, 1024, 64
        $region16: #{tpu_custom_call.1} parent=11 // pred_fallthru
          _
        // Predicated region
        $region17: #{tpu_custom_call.1} parent=11 // pred_check
          %p258 = pneg %p141
        $region18: #{tpu_custom_call.1} parent=11 // pred_check_branch
          %260 = sbr.rel (%p258) target = $region20
        $region19: #{tpu_custom_call.1} parent=11 // pred_region
          _
        $region20: #{tpu_custom_call.1} parent=11 // pred_fallthru
          _
        // Predicated region
        $region21: #{tpu_custom_call.1} parent=11 // pred_check
          %p261 = pneg %p162
        $region22: #{tpu_custom_call.1} parent=11 // pred_check_branch
          %263 = sbr.rel (%p261) target = $region24
        $region23: #{tpu_custom_call.1} parent=11 // pred_region
          _
        $region24: #{tpu_custom_call.1} parent=11 // pred_fallthru
          _
        // Predicated region
        $region25: #{tpu_custom_call.1} parent=11 // pred_check
          %p264 = pneg %p183
        $region26: #{tpu_custom_call.1} parent=11 // pred_check_branch
          %266 = sbr.rel (%p264) target = $region28
        $region27: #{tpu_custom_call.1} parent=11 // pred_region
          _
        $region28: #{tpu_custom_call.1} parent=11 // pred_fallthru
          _
        // Predicated region
        $region29: #{tpu_custom_call.1} parent=11 // pred_check
          %p267 = pneg %p204
        $region30: #{tpu_custom_call.1} parent=11 // pred_check_branch
          %269 = sbr.rel (%p267) target = $region32
        $region31: #{tpu_custom_call.1} parent=11 // pred_region
          _
        $region32: #{tpu_custom_call.1} parent=11 // pred_fallthru
          _
      $region12: #{tpu_custom_call.1} parent=5 // pred_fallthru
        _
      %p270 = scmp.lt.s32.totalorder %s21, 2
      // Predicated region
      $region33: #{tpu_custom_call.1} parent=5 // pred_check
        %p271 = pneg %p270
      $region34: #{tpu_custom_call.1} parent=5 // pred_check_branch
        %273 = sbr.rel (%p271) target = $region36
      $region35: #{tpu_custom_call.1} parent=5 // pred_region
        // Predicated region
        $region37: #{tpu_custom_call.1} parent=35 // pred_check
          %p274 = pneg %p41
        $region38: #{tpu_custom_call.1} parent=35 // pred_check_branch
          %276 = sbr.rel (%p274) target = $region40
        $region39: #{tpu_custom_call.1} parent=35 // pred_region
          %s277 = sand.u32 %s31, 1
          %s278 = sand.u32 %s31, 1
          %s279 = smul.addr %s278, 32
          %s280 = scalar_lea.vmem [#allocation3], %s279
          %s281 = smul.addr %s21, 8
          %s282 = scalar_lea.vmem %s0, %s281
          // Predicated region
          $region41: #{tpu_custom_call.1} parent=39 // pred_check
            _
          $region42: #{tpu_custom_call.1} parent=39 // pred_check_branch
            %284 = sbr.rel (0) target = $region44
          $region43: #{tpu_custom_call.1} parent=39 // pred_region
            // Predicated region
            $region45: #{tpu_custom_call.1} parent=43 // pred_check
              _
            $region46: #{tpu_custom_call.1} parent=43 // pred_check_branch
              %286 = sbr.rel (0) target = $region48
            $region47: #{tpu_custom_call.1} parent=43 // pred_region
              // Predicated region
              $region60: #{tpu_custom_call.1} parent=47 // pred_check
                _
              $region61: #{tpu_custom_call.1} parent=47 // pred_check_branch
                %307 = sbr.rel (0) target = $region63
              $region62: #{tpu_custom_call.1} parent=47 // pred_region
                loop: start=0, step=1, limit=1
                $region64: #{tpu_custom_call.1} parent=62 // loop_pre_header
                  _
                $region65: #{tpu_custom_call.1} parent=62 // loop_header
                  %s309 = sphi 0, %s313
                  %p310 = scmp.ge.s32.totalorder %s309, 1
                  %s314 = sphi %s282, %s282
                  %s315 = sphi %s280, %s280
                $region66: #{tpu_custom_call.1} parent=62 // loop_header_branch
                  %312 = sbr.rel (%p310) target = $region70
                $region67: #{tpu_custom_call.1} parent=62 // loop_body
                  %v316 = vld [vmem:[%s314] sm:$0xff]
                  %317 = vst [vmem:[%s315] sm:$0xff] %v316
                  %v318 = vld [vmem:[%s314 + $0x10] sm:$0xff]
                  %319 = vst [vmem:[%s315 + $0x8] sm:$0xff] %v318
                  %v320 = vld [vmem:[%s314 + $0x20] sm:$0xff]
                  %321 = vst [vmem:[%s315 + $0x10] sm:$0xff] %v320
                  %v322 = vld [vmem:[%s314 + $0x30] sm:$0xff]
                  %323 = vst [vmem:[%s315 + $0x18] sm:$0xff] %v322
                $region68: #{tpu_custom_call.1} parent=62 // loop_footer
                  %s313 = sadd.s32 1, %s309
                $region69: #{tpu_custom_call.1} parent=62 // loop_footer_branch
                  %308 = sbr.rel target = $region65
                $region70: #{tpu_custom_call.1} parent=62 // loop_exit
                  _
              $region63: #{tpu_custom_call.1} parent=47 // pred_fallthru
                _
              // Predicated region
              $region71: #{tpu_custom_call.1} parent=47 // pred_check
                _
              $region72: #{tpu_custom_call.1} parent=47 // pred_check_branch
                %325 = sbr.rel target = $region74
              $region73: #{tpu_custom_call.1} parent=47 // pred_region
                _
              $region74: #{tpu_custom_call.1} parent=47 // pred_fallthru
                _
            $region48: #{tpu_custom_call.1} parent=43 // pred_fallthru
              _
            // Predicated region
            $region49: #{tpu_custom_call.1} parent=43 // pred_check
              _
            $region50: #{tpu_custom_call.1} parent=43 // pred_check_branch
              %288 = sbr.rel target = $region52
            $region51: #{tpu_custom_call.1} parent=43 // pred_region
              loop: start=0, step=1, limit=1
              $region53: #{tpu_custom_call.1} parent=51 // loop_pre_header
                _
              $region54: #{tpu_custom_call.1} parent=51 // loop_header
                %s291 = sphi 0, %s295
                %p292 = scmp.ge.s32.totalorder %s291, 1
                %s296 = sphi %s282, %s282
                %s297 = sphi %s280, %s280
              $region55: #{tpu_custom_call.1} parent=51 // loop_header_branch
                %294 = sbr.rel (%p292) target = $region59
              $region56: #{tpu_custom_call.1} parent=51 // loop_body
                %v298 = vld [vmem:[%s296] sm:$0xff]
                %299 = vst [vmem:[%s297] sm:$0xff] %v298
                %v300 = vld [vmem:[%s296 + $0x10] sm:$0xff]
                %301 = vst [vmem:[%s297 + $0x8] sm:$0xff] %v300
                %v302 = vld [vmem:[%s296 + $0x20] sm:$0xff]
                %303 = vst [vmem:[%s297 + $0x10] sm:$0xff] %v302
                %v304 = vld [vmem:[%s296 + $0x30] sm:$0xff]
                %305 = vst [vmem:[%s297 + $0x18] sm:$0xff] %v304
              $region57: #{tpu_custom_call.1} parent=51 // loop_footer
                %s295 = sadd.s32 1, %s291
              $region58: #{tpu_custom_call.1} parent=51 // loop_footer_branch
                %290 = sbr.rel target = $region54
              $region59: #{tpu_custom_call.1} parent=51 // loop_exit
                _
            $region52: #{tpu_custom_call.1} parent=43 // pred_fallthru
              _
          $region44: #{tpu_custom_call.1} parent=39 // pred_fallthru
            _
          %326 = vnop
        $region40: #{tpu_custom_call.1} parent=35 // pred_fallthru
          _
        // Predicated region
        $region75: #{tpu_custom_call.1} parent=35 // pred_check
          %p327 = pneg %p67
        $region76: #{tpu_custom_call.1} parent=35 // pred_check_branch
          %329 = sbr.rel (%p327) target = $region78
        $region77: #{tpu_custom_call.1} parent=35 // pred_region
          %s330 = sand.u32 %s57, 1
          %s331 = sand.u32 %s57, 1
          %s332 = smul.addr %s331, 32
          %s333 = scalar_lea.vmem [#allocation4], %s332
          %s334 = smul.addr %s21, 8
          %s335 = scalar_lea.vmem %s1, %s334
          // Predicated region
          $region79: #{tpu_custom_call.1} parent=77 // pred_check
            _
          $region80: #{tpu_custom_call.1} parent=77 // pred_check_branch
            %337 = sbr.rel (0) target = $region82
          $region81: #{tpu_custom_call.1} parent=77 // pred_region
            // Predicated region
            $region83: #{tpu_custom_call.1} parent=81 // pred_check
              _
            $region84: #{tpu_custom_call.1} parent=81 // pred_check_branch
              %339 = sbr.rel (0) target = $region86
            $region85: #{tpu_custom_call.1} parent=81 // pred_region
              // Predicated region
              $region98: #{tpu_custom_call.1} parent=85 // pred_check
                _
              $region99: #{tpu_custom_call.1} parent=85 // pred_check_branch
                %360 = sbr.rel (0) target = $region101
              $region100: #{tpu_custom_call.1} parent=85 // pred_region
                loop: start=0, step=1, limit=1
                $region102: #{tpu_custom_call.1} parent=100 // loop_pre_header
                  _
                $region103: #{tpu_custom_call.1} parent=100 // loop_header
                  %s362 = sphi 0, %s366
                  %p363 = scmp.ge.s32.totalorder %s362, 1
                  %s367 = sphi %s335, %s335
                  %s368 = sphi %s333, %s333
                $region104: #{tpu_custom_call.1} parent=100 // loop_header_branch
                  %365 = sbr.rel (%p363) target = $region108
                $region105: #{tpu_custom_call.1} parent=100 // loop_body
                  %v369 = vld [vmem:[%s367] sm:$0xff]
                  %370 = vst [vmem:[%s368] sm:$0xff] %v369
                  %v371 = vld [vmem:[%s367 + $0x10] sm:$0xff]
                  %372 = vst [vmem:[%s368 + $0x8] sm:$0xff] %v371
                  %v373 = vld [vmem:[%s367 + $0x20] sm:$0xff]
                  %374 = vst [vmem:[%s368 + $0x10] sm:$0xff] %v373
                  %v375 = vld [vmem:[%s367 + $0x30] sm:$0xff]
                  %376 = vst [vmem:[%s368 + $0x18] sm:$0xff] %v375
                $region106: #{tpu_custom_call.1} parent=100 // loop_footer
                  %s366 = sadd.s32 1, %s362
                $region107: #{tpu_custom_call.1} parent=100 // loop_footer_branch
                  %361 = sbr.rel target = $region103
                $region108: #{tpu_custom_call.1} parent=100 // loop_exit
                  _
              $region101: #{tpu_custom_call.1} parent=85 // pred_fallthru
                _
              // Predicated region
              $region109: #{tpu_custom_call.1} parent=85 // pred_check
                _
              $region110: #{tpu_custom_call.1} parent=85 // pred_check_branch
                %378 = sbr.rel target = $region112
              $region111: #{tpu_custom_call.1} parent=85 // pred_region
                _
              $region112: #{tpu_custom_call.1} parent=85 // pred_fallthru
                _
            $region86: #{tpu_custom_call.1} parent=81 // pred_fallthru
              _
            // Predicated region
            $region87: #{tpu_custom_call.1} parent=81 // pred_check
              _
            $region88: #{tpu_custom_call.1} parent=81 // pred_check_branch
              %341 = sbr.rel target = $region90
            $region89: #{tpu_custom_call.1} parent=81 // pred_region
              loop: start=0, step=1, limit=1
              $region91: #{tpu_custom_call.1} parent=89 // loop_pre_header
                _
              $region92: #{tpu_custom_call.1} parent=89 // loop_header
                %s344 = sphi 0, %s348
                %p345 = scmp.ge.s32.totalorder %s344, 1
                %s349 = sphi %s335, %s335
                %s350 = sphi %s333, %s333
              $region93: #{tpu_custom_call.1} parent=89 // loop_header_branch
                %347 = sbr.rel (%p345) target = $region97
              $region94: #{tpu_custom_call.1} parent=89 // loop_body
                %v351 = vld [vmem:[%s349] sm:$0xff]
                %352 = vst [vmem:[%s350] sm:$0xff] %v351
                %v353 = vld [vmem:[%s349 + $0x10] sm:$0xff]
                %354 = vst [vmem:[%s350 + $0x8] sm:$0xff] %v353
                %v355 = vld [vmem:[%s349 + $0x20] sm:$0xff]
                %356 = vst [vmem:[%s350 + $0x10] sm:$0xff] %v355
                %v357 = vld [vmem:[%s349 + $0x30] sm:$0xff]
                %358 = vst [vmem:[%s350 + $0x18] sm:$0xff] %v357
              $region95: #{tpu_custom_call.1} parent=89 // loop_footer
                %s348 = sadd.s32 1, %s344
              $region96: #{tpu_custom_call.1} parent=89 // loop_footer_branch
                %343 = sbr.rel target = $region92
              $region97: #{tpu_custom_call.1} parent=89 // loop_exit
                _
            $region90: #{tpu_custom_call.1} parent=81 // pred_fallthru
              _
          $region82: #{tpu_custom_call.1} parent=77 // pred_fallthru
            _
          %379 = vnop
        $region78: #{tpu_custom_call.1} parent=35 // pred_fallthru
          _
        // Predicated region
        $region113: #{tpu_custom_call.1} parent=35 // pred_check
          %p380 = pneg %p93
        $region114: #{tpu_custom_call.1} parent=35 // pred_check_branch
          %382 = sbr.rel (%p380) target = $region116
        $region115: #{tpu_custom_call.1} parent=35 // pred_region
          %s383 = sand.u32 %s83, 1
          %s384 = scalar_lea.sflag [#allocation6], %s383
          %s385 = sand.u32 %s83, 1
          %s386 = smul.addr %s385, 32
          %s387 = scalar_lea.vmem [#allocation5], %s386
          %s389 = ssub.s32 512, 512
          %390 = vsyncadd %s384, %s389
          %s391 = smul.addr %s21, 128
          %s392 = scalar_lea.hbm %s2, %s391
          %s393 = sshll.u32 %s387, 4
          %s394 = int_to_ptr.vmem [resolvable:$true] %s393
          %399 = dma.hbm_to_vmem [thread:$0]  %s392, 512, %s394, %s384, 256, 128, 8
        $region116: #{tpu_custom_call.1} parent=35 // pred_fallthru
          _
      $region36: #{tpu_custom_call.1} parent=5 // pred_fallthru
        _
      %p400 = scmp.le.s32.totalorder 1, %s21
      %p401 = scmp.lt.s32.totalorder %s21, 3
      %p402 = pnand %p400, %p401
      %p403 = pneg %p402
      // Predicated region
      $region117: #{tpu_custom_call.1} parent=5 // pred_check
        _
      $region118: #{tpu_custom_call.1} parent=5 // pred_check_branch
        %405 = sbr.rel (%p402) target = $region120
      $region119: #{tpu_custom_call.1} parent=5 // pred_region
        %s406 = ssub.s32 %s21, 1
        %s407 = sand.u32 %s34, 1
        %s408 = sand.u32 %s34, 1
        %s409 = smul.addr %s408, 32
        %s410 = scalar_lea.vmem [#allocation3], %s409
        // Predicated region
        $region121: #{tpu_custom_call.1} parent=119 // pred_check
          %p411 = pneg %p47
        $region122: #{tpu_custom_call.1} parent=119 // pred_check_branch
          %413 = sbr.rel (%p411) target = $region124
        $region123: #{tpu_custom_call.1} parent=119 // pred_region
          _
        $region124: #{tpu_custom_call.1} parent=119 // pred_fallthru
          _
        %s414 = sand.u32 %s60, 1
        %s415 = sand.u32 %s60, 1
        %s416 = smul.addr %s415, 32
        %s417 = scalar_lea.vmem [#allocation4], %s416
        // Predicated region
        $region125: #{tpu_custom_call.1} parent=119 // pred_check
          %p418 = pneg %p73
        $region126: #{tpu_custom_call.1} parent=119 // pred_check_branch
          %420 = sbr.rel (%p418) target = $region128
        $region127: #{tpu_custom_call.1} parent=119 // pred_region
          _
        $region128: #{tpu_custom_call.1} parent=119 // pred_fallthru
          _
        %s421 = sand.u32 %s86, 1
        %s422 = scalar_lea.sflag [#allocation6], %s421
        %s423 = sand.u32 %s86, 1
        %s424 = smul.addr %s423, 32
        %s425 = scalar_lea.vmem [#allocation5], %s424
        // Predicated region
        $region129: #{tpu_custom_call.1} parent=119 // pred_check
          %p426 = pneg %p99
        $region130: #{tpu_custom_call.1} parent=119 // pred_check_branch
          %428 = sbr.rel (%p426) target = $region132
        $region131: #{tpu_custom_call.1} parent=119 // pred_region
          %429 = dma.done %s422, 512
        $region132: #{tpu_custom_call.1} parent=119 // pred_fallthru
          _
        // Predicated region
        $region133: #{tpu_custom_call.1} parent=119 // pred_check
          %p430 = pneg %p120
        $region134: #{tpu_custom_call.1} parent=119 // pred_check_branch
          %432 = sbr.rel (%p430) target = $region136
        $region135: #{tpu_custom_call.1} parent=119 // pred_region
          %433 = dma.done [#allocation9], 4096
        $region136: #{tpu_custom_call.1} parent=119 // pred_fallthru
          _
        %s434 = sand.u32 %s34, 1
        %s435 = sand.u32 %s34, 1
        %s436 = smul.addr %s435, 32
        %s437 = scalar_lea.vmem [#allocation3], %s436
        %p438 = pneg %p47
        %p439 = pneg %p44
        %s440 = sand.u32 %s60, 1
        %s441 = sand.u32 %s60, 1
        %s442 = smul.addr %s441, 32
        %s443 = scalar_lea.vmem [#allocation4], %s442
        %p444 = pneg %p73
        %p445 = pneg %p70
        %s446 = sand.u32 %s86, 1
        %s447 = scalar_lea.sflag [#allocation6], %s446
        %s448 = sand.u32 %s86, 1
        %s449 = smul.addr %s448, 32
        %s450 = scalar_lea.vmem [#allocation5], %s449
        %p451 = pneg %p99
        %p452 = pneg %p96
        %p453 = pneg %p120
        %p454 = pneg %p117
        %p455 = pneg %p141
        %p456 = pneg %p138
        %p457 = pneg %p162
        %p458 = pneg %p159
        %p459 = pneg %p183
        %p460 = pneg %p180
        %p461 = pneg %p204
        %p462 = pneg %p201
        %p463 = pneg %p230
        %p464 = pneg %p227
        %s465 = sand.u32 %s217, 1
        %s466 = scalar_lea.sflag [#allocation7], %s465
        %s467 = sand.u32 %s217, 1
        %s468 = scalar_lea.vmem [#allocation10], %s467
        %v469 = vld [vmem:[%s410] sm:$0xff]
        %v470 = vld [vmem:[%s410 + $0x8] sm:$0xff]
        %v471 = vld [vmem:[%s410 + $0x10] sm:$0xff]
        %v472 = vld [vmem:[%s410 + $0x18] sm:$0xff]
        %v473 = vld [vmem:[%s4] sm:$0xff]
        %v474 = vld [vmem:[%s4 + $0x8] sm:$0xff]
        %v475 = vld [vmem:[%s4 + $0x10] sm:$0xff]
        %v476 = vld [vmem:[%s4 + $0x18] sm:$0xff]
        %478 = vset.pattern.permute.xlu0 0
        %479 = vperm.xlu0 %478, %v473
        %v480 = vpop.permute.xlu0 %479
        %483 = vset.pattern.permute.xlu0 0
        %484 = vperm.xlu0 %483, %v474
        %v485 = vpop.permute.xlu0 %484
        %488 = vset.pattern.permute.xlu0 0
        %489 = vperm.xlu0 %488, %v475
        %v490 = vpop.permute.xlu0 %489
        %493 = vset.pattern.permute.xlu0 0
        %494 = vperm.xlu0 %493, %v476
        %v495 = vpop.permute.xlu0 %494
        %v497 = vmul.f32 %v469, %v480
        %v498 = vmul.f32 %v470, %v485
        %v499 = vmul.f32 %v471, %v490
        %v500 = vmul.f32 %v472, %v495
        %v501 = vld [vmem:[%s5] sm:$0xff]
        %v502 = vld [vmem:[%s5 + $0x8] sm:$0xff]
        %v503 = vld [vmem:[%s5 + $0x10] sm:$0xff]
        %v504 = vld [vmem:[%s5 + $0x18] sm:$0xff]
        %506 = vset.pattern.permute.xlu0 0
        %507 = vperm.xlu0 %506, %v501
        %v508 = vpop.permute.xlu0 %507
        %511 = vset.pattern.permute.xlu0 0
        %512 = vperm.xlu0 %511, %v502
        %v513 = vpop.permute.xlu0 %512
        %516 = vset.pattern.permute.xlu0 0
        %517 = vperm.xlu0 %516, %v503
        %v518 = vpop.permute.xlu0 %517
        %521 = vset.pattern.permute.xlu0 0
        %522 = vperm.xlu0 %521, %v504
        %v523 = vpop.permute.xlu0 %522
        %v525 = vadd.f32 %v497, %v508
        %v526 = vadd.f32 %v498, %v513
        %v527 = vadd.f32 %v499, %v518
        %v528 = vadd.f32 %v500, %v523
        loop: start=0, step=1, limit=32
        $region137: #{tpu_custom_call.1} parent=119 // loop_pre_header
          _
        $region138: #{tpu_custom_call.1} parent=119 // loop_header
          %s530 = sphi 0, %s534
          %p531 = scmp.ge.s32.totalorder %s530, 32
        $region139: #{tpu_custom_call.1} parent=119 // loop_header_branch
          %533 = sbr.rel (%p531) target = $region143
        $region140: #{tpu_custom_call.1} parent=119 // loop_body
          %s535 = scalar_lea.vmem %s417, %s530 [#allocation4]
          %v536 = vld [vmem:[%s535] sm:$0x1]
          %v537 = vlaneseq
          %v538 = vshrl.u32 %v537, 7
          %v539 = vsub.s32 0, %v538
          %v540 = vrot.slane %v536, %v539
          %v541 = vmul.f32 %v525, %v540
          %v542 = vmul.f32 %v526, %v540
          %v543 = vmul.f32 %v527, %v540
          %v544 = vmul.f32 %v528, %v540
          %s545 = smul.u32 %s530, 32
          %s546 = scalar_lea.vmem [#allocation2], %s545
          %547 = vst [vmem:[%s546] sm:$0xff] %v541
          %548 = vst [vmem:[%s546 + $0x8] sm:$0xff] %v542
          %549 = vst [vmem:[%s546 + $0x10] sm:$0xff] %v543
          %550 = vst [vmem:[%s546 + $0x18] sm:$0xff] %v544
        $region141: #{tpu_custom_call.1} parent=119 // loop_footer
          %s534 = sadd.s32 1, %s530
        $region142: #{tpu_custom_call.1} parent=119 // loop_footer_branch
          %529 = sbr.rel target = $region138
        $region143: #{tpu_custom_call.1} parent=119 // loop_exit
          _
        %v551 = vld [vmem:[#allocation8] sm:$0xff]
        %v552 = vld [vmem:[#allocation8 + $0x8] sm:$0xff]
        %v553 = vld [vmem:[#allocation8 + $0x10] sm:$0xff]
        %v554 = vld [vmem:[#allocation8 + $0x18] sm:$0xff]
        %v555 = vld [vmem:[#allocation8 + $0x20] sm:$0xff]
        %v556 = vld [vmem:[#allocation8 + $0x28] sm:$0xff]
        %v557 = vld [vmem:[#allocation8 + $0x30] sm:$0xff]
        %v558 = vld [vmem:[#allocation8 + $0x38] sm:$0xff]
        %v559 = vld [vmem:[#allocation8 + $0x40] sm:$0xff]
        %v560 = vld [vmem:[#allocation8 + $0x48] sm:$0xff]
        %v561 = vld [vmem:[#allocation8 + $0x50] sm:$0xff]
        %v562 = vld [vmem:[#allocation8 + $0x58] sm:$0xff]
        %v563 = vld [vmem:[#allocation8 + $0x60] sm:$0xff]
        %v564 = vld [vmem:[#allocation8 + $0x68] sm:$0xff]
        %v565 = vld [vmem:[#allocation8 + $0x70] sm:$0xff]
        %v566 = vld [vmem:[#allocation8 + $0x78] sm:$0xff]
        %v567 = vld [vmem:[#allocation8 + $0x80] sm:$0xff]
        %v568 = vld [vmem:[#allocation8 + $0x88] sm:$0xff]
        %v569 = vld [vmem:[#allocation8 + $0x90] sm:$0xff]
        %v570 = vld [vmem:[#allocation8 + $0x98] sm:$0xff]
        %v571 = vld [vmem:[#allocation8 + $0xa0] sm:$0xff]
        %v572 = vld [vmem:[#allocation8 + $0xa8] sm:$0xff]
        %v573 = vld [vmem:[#allocation8 + $0xb0] sm:$0xff]
        %v574 = vld [vmem:[#allocation8 + $0xb8] sm:$0xff]
        %v575 = vld [vmem:[#allocation8 + $0xc0] sm:$0xff]
        %v576 = vld [vmem:[#allocation8 + $0xc8] sm:$0xff]
        %v577 = vld [vmem:[#allocation8 + $0xd0] sm:$0xff]
        %v578 = vld [vmem:[#allocation8 + $0xd8] sm:$0xff]
        %v579 = vld [vmem:[#allocation8 + $0xe0] sm:$0xff]
        %v580 = vld [vmem:[#allocation8 + $0xe8] sm:$0xff]
        %v581 = vld [vmem:[#allocation8 + $0xf0] sm:$0xff]
        %v582 = vld [vmem:[#allocation8 + $0xf8] sm:$0xff]
        %v583 = vld [vmem:[#allocation2] sm:$0xff]
        %v584 = vld [vmem:[#allocation2 + $0x8] sm:$0xff]
        %v585 = vld [vmem:[#allocation2 + $0x10] sm:$0xff]
        %v586 = vld [vmem:[#allocation2 + $0x18] sm:$0xff]
        %v587 = vld [vmem:[#allocation2 + $0x20] sm:$0xff]
        %v588 = vld [vmem:[#allocation2 + $0x28] sm:$0xff]
        %v589 = vld [vmem:[#allocation2 + $0x30] sm:$0xff]
        %v590 = vld [vmem:[#allocation2 + $0x38] sm:$0xff]
        %v591 = vld [vmem:[#allocation2 + $0x40] sm:$0xff]
        %v592 = vld [vmem:[#allocation2 + $0x48] sm:$0xff]
        %v593 = vld [vmem:[#allocation2 + $0x50] sm:$0xff]
        %v594 = vld [vmem:[#allocation2 + $0x58] sm:$0xff]
        %v595 = vld [vmem:[#allocation2 + $0x60] sm:$0xff]
        %v596 = vld [vmem:[#allocation2 + $0x68] sm:$0xff]
        %v597 = vld [vmem:[#allocation2 + $0x70] sm:$0xff]
        %v598 = vld [vmem:[#allocation2 + $0x78] sm:$0xff]
        %v599 = vld [vmem:[#allocation2 + $0x80] sm:$0xff]
        %v600 = vld [vmem:[#allocation2 + $0x88] sm:$0xff]
        %v601 = vld [vmem:[#allocation2 + $0x90] sm:$0xff]
        %v602 = vld [vmem:[#allocation2 + $0x98] sm:$0xff]
        %v603 = vld [vmem:[#allocation2 + $0xa0] sm:$0xff]
        %v604 = vld [vmem:[#allocation2 + $0xa8] sm:$0xff]
        %v605 = vld [vmem:[#allocation2 + $0xb0] sm:$0xff]
        %v606 = vld [vmem:[#allocation2 + $0xb8] sm:$0xff]
        %v607 = vld [vmem:[#allocation2 + $0xc0] sm:$0xff]
        %v608 = vld [vmem:[#allocation2 + $0xc8] sm:$0xff]
        %v609 = vld [vmem:[#allocation2 + $0xd0] sm:$0xff]
        %v610 = vld [vmem:[#allocation2 + $0xd8] sm:$0xff]
        %v611 = vld [vmem:[#allocation2 + $0xe0] sm:$0xff]
        %v612 = vld [vmem:[#allocation2 + $0xe8] sm:$0xff]
        %v613 = vld [vmem:[#allocation2 + $0xf0] sm:$0xff]
        %v614 = vld [vmem:[#allocation2 + $0xf8] sm:$0xff]
        %v615 = vld [vmem:[#allocation2 + $0x100] sm:$0xff]
        %v616 = vld [vmem:[#allocation2 + $0x108] sm:$0xff]
        %v617 = vld [vmem:[#allocation2 + $0x110] sm:$0xff]
        %v618 = vld [vmem:[#allocation2 + $0x118] sm:$0xff]
        %v619 = vld [vmem:[#allocation2 + $0x120] sm:$0xff]
        %v620 = vld [vmem:[#allocation2 + $0x128] sm:$0xff]
        %v621 = vld [vmem:[#allocation2 + $0x130] sm:$0xff]
        %v622 = vld [vmem:[#allocation2 + $0x138] sm:$0xff]
        %v623 = vld [vmem:[#allocation2 + $0x140] sm:$0xff]
        %v624 = vld [vmem:[#allocation2 + $0x148] sm:$0xff]
        %v625 = vld [vmem:[#allocation2 + $0x150] sm:$0xff]
        %v626 = vld [vmem:[#allocation2 + $0x158] sm:$0xff]
        %v627 = vld [vmem:[#allocation2 + $0x160] sm:$0xff]
        %v628 = vld [vmem:[#allocation2 + $0x168] sm:$0xff]
        %v629 = vld [vmem:[#allocation2 + $0x170] sm:$0xff]
        %v630 = vld [vmem:[#allocation2 + $0x178] sm:$0xff]
        %v631 = vld [vmem:[#allocation2 + $0x180] sm:$0xff]
        %v632 = vld [vmem:[#allocation2 + $0x188] sm:$0xff]
        %v633 = vld [vmem:[#allocation2 + $0x190] sm:$0xff]
        %v634 = vld [vmem:[#allocation2 + $0x198] sm:$0xff]
        %v635 = vld [vmem:[#allocation2 + $0x1a0] sm:$0xff]
        %v636 = vld [vmem:[#allocation2 + $0x1a8] sm:$0xff]
        %v637 = vld [vmem:[#allocation2 + $0x1b0] sm:$0xff]
        %v638 = vld [vmem:[#allocation2 + $0x1b8] sm:$0xff]
        %v639 = vld [vmem:[#allocation2 + $0x1c0] sm:$0xff]
        %v640 = vld [vmem:[#allocation2 + $0x1c8] sm:$0xff]
        %v641 = vld [vmem:[#allocation2 + $0x1d0] sm:$0xff]
        %v642 = vld [vmem:[#allocation2 + $0x1d8] sm:$0xff]
        %v643 = vld [vmem:[#allocation2 + $0x1e0] sm:$0xff]
        %v644 = vld [vmem:[#allocation2 + $0x1e8] sm:$0xff]
        %v645 = vld [vmem:[#allocation2 + $0x1f0] sm:$0xff]
        %v646 = vld [vmem:[#allocation2 + $0x1f8] sm:$0xff]
        %v647 = vld [vmem:[#allocation2 + $0x200] sm:$0xff]
        %v648 = vld [vmem:[#allocation2 + $0x208] sm:$0xff]
        %v649 = vld [vmem:[#allocation2 + $0x210] sm:$0xff]
        %v650 = vld [vmem:[#allocation2 + $0x218] sm:$0xff]
        %v651 = vld [vmem:[#allocation2 + $0x220] sm:$0xff]
        %v652 = vld [vmem:[#allocation2 + $0x228] sm:$0xff]
        %v653 = vld [vmem:[#allocation2 + $0x230] sm:$0xff]
        %v654 = vld [vmem:[#allocation2 + $0x238] sm:$0xff]
        %v655 = vld [vmem:[#allocation2 + $0x240] sm:$0xff]
        %v656 = vld [vmem:[#allocation2 + $0x248] sm:$0xff]
        %v657 = vld [vmem:[#allocation2 + $0x250] sm:$0xff]
        %v658 = vld [vmem:[#allocation2 + $0x258] sm:$0xff]
        %v659 = vld [vmem:[#allocation2 + $0x260] sm:$0xff]
        %v660 = vld [vmem:[#allocation2 + $0x268] sm:$0xff]
        %v661 = vld [vmem:[#allocation2 + $0x270] sm:$0xff]
        %v662 = vld [vmem:[#allocation2 + $0x278] sm:$0xff]
        %v663 = vld [vmem:[#allocation2 + $0x280] sm:$0xff]
        %v664 = vld [vmem:[#allocation2 + $0x288] sm:$0xff]
        %v665 = vld [vmem:[#allocation2 + $0x290] sm:$0xff]
        %v666 = vld [vmem:[#allocation2 + $0x298] sm:$0xff]
        %v667 = vld [vmem:[#allocation2 + $0x2a0] sm:$0xff]
        %v668 = vld [vmem:[#allocation2 + $0x2a8] sm:$0xff]
        %v669 = vld [vmem:[#allocation2 + $0x2b0] sm:$0xff]
        %v670 = vld [vmem:[#allocation2 + $0x2b8] sm:$0xff]
        %v671 = vld [vmem:[#allocation2 + $0x2c0] sm:$0xff]
        %v672 = vld [vmem:[#allocation2 + $0x2c8] sm:$0xff]
        %v673 = vld [vmem:[#allocation2 + $0x2d0] sm:$0xff]
        %v674 = vld [vmem:[#allocation2 + $0x2d8] sm:$0xff]
        %v675 = vld [vmem:[#allocation2 + $0x2e0] sm:$0xff]
        %v676 = vld [vmem:[#allocation2 + $0x2e8] sm:$0xff]
        %v677 = vld [vmem:[#allocation2 + $0x2f0] sm:$0xff]
        %v678 = vld [vmem:[#allocation2 + $0x2f8] sm:$0xff]
        %v679 = vld [vmem:[#allocation2 + $0x300] sm:$0xff]
        %v680 = vld [vmem:[#allocation2 + $0x308] sm:$0xff]
        %v681 = vld [vmem:[#allocation2 + $0x310] sm:$0xff]
        %v682 = vld [vmem:[#allocation2 + $0x318] sm:$0xff]
        %v683 = vld [vmem:[#allocation2 + $0x320] sm:$0xff]
        %v684 = vld [vmem:[#allocation2 + $0x328] sm:$0xff]
        %v685 = vld [vmem:[#allocation2 + $0x330] sm:$0xff]
        %v686 = vld [vmem:[#allocation2 + $0x338] sm:$0xff]
        %v687 = vld [vmem:[#allocation2 + $0x340] sm:$0xff]
        %v688 = vld [vmem:[#allocation2 + $0x348] sm:$0xff]
        %v689 = vld [vmem:[#allocation2 + $0x350] sm:$0xff]
        %v690 = vld [vmem:[#allocation2 + $0x358] sm:$0xff]
        %v691 = vld [vmem:[#allocation2 + $0x360] sm:$0xff]
        %v692 = vld [vmem:[#allocation2 + $0x368] sm:$0xff]
        %v693 = vld [vmem:[#allocation2 + $0x370] sm:$0xff]
        %v694 = vld [vmem:[#allocation2 + $0x378] sm:$0xff]
        %v695 = vld [vmem:[#allocation2 + $0x380] sm:$0xff]
        %v696 = vld [vmem:[#allocation2 + $0x388] sm:$0xff]
        %v697 = vld [vmem:[#allocation2 + $0x390] sm:$0xff]
        %v698 = vld [vmem:[#allocation2 + $0x398] sm:$0xff]
        %v699 = vld [vmem:[#allocation2 + $0x3a0] sm:$0xff]
        %v700 = vld [vmem:[#allocation2 + $0x3a8] sm:$0xff]
        %v701 = vld [vmem:[#allocation2 + $0x3b0] sm:$0xff]
        %v702 = vld [vmem:[#allocation2 + $0x3b8] sm:$0xff]
        %v703 = vld [vmem:[#allocation2 + $0x3c0] sm:$0xff]
        %v704 = vld [vmem:[#allocation2 + $0x3c8] sm:$0xff]
        %v705 = vld [vmem:[#allocation2 + $0x3d0] sm:$0xff]
        %v706 = vld [vmem:[#allocation2 + $0x3d8] sm:$0xff]
        %v707 = vld [vmem:[#allocation2 + $0x3e0] sm:$0xff]
        %v708 = vld [vmem:[#allocation2 + $0x3e8] sm:$0xff]
        %v709 = vld [vmem:[#allocation2 + $0x3f0] sm:$0xff]
        %v710 = vld [vmem:[#allocation2 + $0x3f8] sm:$0xff]
        %711 = vmatprep.subr.mxu0 0.0
        %712 = vmatpush1.msra.mxu0 %v583
        %713 = vmatprep.subr.mxu0 0.0
        %714 = vmatpush1.msra.mxu0 %v584
        %715 = vmatprep.subr.mxu0 0.0
        %716 = vmatpush1.msra.mxu0 %v585
        %717 = vmatprep.subr.mxu0 0.0
        %718 = vmatpush1.msra.mxu0 %v586
        %719 = vmatprep.subr.mxu0 0.0
        %720 = vmatpush1.msra.mxu0 %v587
        %721 = vmatprep.subr.mxu0 0.0
        %722 = vmatpush1.msra.mxu0 %v588
        %723 = vmatprep.subr.mxu0 0.0
        %724 = vmatpush1.msra.mxu0 %v589
        %725 = vmatprep.subr.mxu0 0.0
        %726 = vmatpush1.msra.mxu0 %v590
        %727 = vmatprep.subr.mxu0 0.0
        %728 = vmatpush1.msra.mxu0 %v591
        %729 = vmatprep.subr.mxu0 0.0
        %730 = vmatpush1.msra.mxu0 %v592
        %731 = vmatprep.subr.mxu0 0.0
        %732 = vmatpush1.msra.mxu0 %v593
        %733 = vmatprep.subr.mxu0 0.0
        %734 = vmatpush1.msra.mxu0 %v594
        %735 = vmatprep.subr.mxu0 0.0
        %736 = vmatpush1.msra.mxu0 %v595
        %737 = vmatprep.subr.mxu0 0.0
        %738 = vmatpush1.msra.mxu0 %v596
        %739 = vmatprep.subr.mxu0 0.0
        %740 = vmatpush1.msra.mxu0 %v597
        %741 = vmatprep.subr.mxu0 0.0
        %742 = vmatpush1.msra.mxu0 %v598
        %743 = vmatprep.subr.mxu0 0.0
        %744 = vmatpush1.msra.mxu0 %v599
        %745 = vmatprep.subr.mxu0 0.0
        %746 = vmatpush1.msra.mxu0 %v600
        %747 = vmatprep.subr.mxu0 0.0
        %748 = vmatpush1.msra.mxu0 %v601
        %749 = vmatprep.subr.mxu0 0.0
        %750 = vmatpush1.msra.mxu0 %v602
        %751 = vmatprep.subr.mxu0 0.0
        %752 = vmatpush1.msra.mxu0 %v603
        %753 = vmatprep.subr.mxu0 0.0
        %754 = vmatpush1.msra.mxu0 %v604
        %755 = vmatprep.subr.mxu0 0.0
        %756 = vmatpush1.msra.mxu0 %v605
        %757 = vmatprep.subr.mxu0 0.0
        %758 = vmatpush1.msra.mxu0 %v606
        %759 = vmatprep.subr.mxu0 0.0
        %760 = vmatpush1.msra.mxu0 %v607
        %761 = vmatprep.subr.mxu0 0.0
        %762 = vmatpush1.msra.mxu0 %v608
        %763 = vmatprep.subr.mxu0 0.0
        %764 = vmatpush1.msra.mxu0 %v609
        %765 = vmatprep.subr.mxu0 0.0
        %766 = vmatpush1.msra.mxu0 %v610
        %767 = vmatprep.subr.mxu0 0.0
        %768 = vmatpush1.msra.mxu0 %v611
        %769 = vmatprep.subr.mxu0 0.0
        %770 = vmatpush1.msra.mxu0 %v612
        %771 = vmatprep.subr.mxu0 0.0
        %772 = vmatpush1.msra.mxu0 %v613
        %773 = vmatprep.subr.mxu0 0.0
        %774 = vmatpush1.msra.mxu0 %v614
        %775 = vmatprep.mubr.f32.mxu0 %v552
        %776 = vmatmul.mubr.f32.gmra.mrb[0].mxu0 %v551
        %v777 = vpop.f32.mrb[0].mxu0
        %v778 = vadd.f32 0.0, %v777
        %v779 = vpop.f32.mrb[0].mxu0
        %780 = vmatprep.mubr.f32.mxu0 %v560
        %781 = vmatmul.mubr.f32.gmra.mrb[0].mxu0 %v559
        %v782 = vpop.f32.mrb[0].mxu0
        %v783 = vadd.f32 0.0, %v782
        %v784 = vpop.f32.mrb[0].mxu0
        %785 = vmatprep.mubr.f32.mxu0 %v568
        %786 = vmatmul.mubr.f32.gmra.mrb[0].mxu0 %v567
        %v787 = vpop.f32.mrb[0].mxu0
        %v788 = vadd.f32 0.0, %v787
        %v789 = vpop.f32.mrb[0].mxu0
        %790 = vmatprep.mubr.f32.mxu0 %v576
        %791 = vmatmul.mubr.f32.gmra.mrb[0].mxu0 %v575
        %v792 = vpop.f32.mrb[0].mxu0
        %v793 = vadd.f32 0.0, %v792
        %v794 = vpop.f32.mrb[0].mxu0
        %795 = vdwg.mxu0
        %796 = vmatprep.subr.mxu0 0.0
        %797 = vmatpush1.msra.mxu0 %v615
        %798 = vmatprep.subr.mxu0 0.0
        %799 = vmatpush1.msra.mxu0 %v616
        %800 = vmatprep.subr.mxu0 0.0
        %801 = vmatpush1.msra.mxu0 %v617
        %802 = vmatprep.subr.mxu0 0.0
        %803 = vmatpush1.msra.mxu0 %v618
        %804 = vmatprep.subr.mxu0 0.0
        %805 = vmatpush1.msra.mxu0 %v619
        %806 = vmatprep.subr.mxu0 0.0
        %807 = vmatpush1.msra.mxu0 %v620
        %808 = vmatprep.subr.mxu0 0.0
        %809 = vmatpush1.msra.mxu0 %v621
        %810 = vmatprep.subr.mxu0 0.0
        %811 = vmatpush1.msra.mxu0 %v622
        %812 = vmatprep.subr.mxu0 0.0
        %813 = vmatpush1.msra.mxu0 %v623
        %814 = vmatprep.subr.mxu0 0.0
        %815 = vmatpush1.msra.mxu0 %v624
        %816 = vmatprep.subr.mxu0 0.0
        %817 = vmatpush1.msra.mxu0 %v625
        %818 = vmatprep.subr.mxu0 0.0
        %819 = vmatpush1.msra.mxu0 %v626
        %820 = vmatprep.subr.mxu0 0.0
        %821 = vmatpush1.msra.mxu0 %v627
        %822 = vmatprep.subr.mxu0 0.0
        %823 = vmatpush1.msra.mxu0 %v628
        %824 = vmatprep.subr.mxu0 0.0
        %825 = vmatpush1.msra.mxu0 %v629
        %826 = vmatprep.subr.mxu0 0.0
        %827 = vmatpush1.msra.mxu0 %v630
        %828 = vmatprep.subr.mxu0 0.0
        %829 = vmatpush1.msra.mxu0 %v631
        %830 = vmatprep.subr.mxu0 0.0
        %831 = vmatpush1.msra.mxu0 %v632
        %832 = vmatprep.subr.mxu0 0.0
        %833 = vmatpush1.msra.mxu0 %v633
        %834 = vmatprep.subr.mxu0 0.0
        %835 = vmatpush1.msra.mxu0 %v634
        %836 = vmatprep.subr.mxu0 0.0
        %837 = vmatpush1.msra.mxu0 %v635
        %838 = vmatprep.subr.mxu0 0.0
        %839 = vmatpush1.msra.mxu0 %v636
        %840 = vmatprep.subr.mxu0 0.0
        %841 = vmatpush1.msra.mxu0 %v637
        %842 = vmatprep.subr.mxu0 0.0
        %843 = vmatpush1.msra.mxu0 %v638
        %844 = vmatprep.subr.mxu0 0.0
        %845 = vmatpush1.msra.mxu0 %v639
        %846 = vmatprep.subr.mxu0 0.0
        %847 = vmatpush1.msra.mxu0 %v640
        %848 = vmatprep.subr.mxu0 0.0
        %849 = vmatpush1.msra.mxu0 %v641
        %850 = vmatprep.subr.mxu0 0.0
        %851 = vmatpush1.msra.mxu0 %v642
        %852 = vmatprep.subr.mxu0 0.0
        %853 = vmatpush1.msra.mxu0 %v643
        %854 = vmatprep.subr.mxu0 0.0
        %855 = vmatpush1.msra.mxu0 %v644
        %856 = vmatprep.subr.mxu0 0.0
        %857 = vmatpush1.msra.mxu0 %v645
        %858 = vmatprep.subr.mxu0 0.0
        %859 = vmatpush1.msra.mxu0 %v646
        %860 = vmatprep.mubr.f32.mxu0 %v554
        %861 = vmatmul.mubr.f32.gmra.mrb[0].mxu0 %v553
        %v862 = vpop.f32.mrb[0].mxu0
        %v863 = vadd.f32 %v778, %v862
        %v864 = vpop.f32.mrb[0].mxu0
        %865 = vmatprep.mubr.f32.mxu0 %v562
        %866 = vmatmul.mubr.f32.gmra.mrb[0].mxu0 %v561
        %v867 = vpop.f32.mrb[0].mxu0
        %v868 = vadd.f32 %v783, %v867
        %v869 = vpop.f32.mrb[0].mxu0
        %870 = vmatprep.mubr.f32.mxu0 %v570
        %871 = vmatmul.mubr.f32.gmra.mrb[0].mxu0 %v569
        %v872 = vpop.f32.mrb[0].mxu0
        %v873 = vadd.f32 %v788, %v872
        %v874 = vpop.f32.mrb[0].mxu0
        %875 = vmatprep.mubr.f32.mxu0 %v578
        %876 = vmatmul.mubr.f32.gmra.mrb[0].mxu0 %v577
        %v877 = vpop.f32.mrb[0].mxu0
        %v878 = vadd.f32 %v793, %v877
        %v879 = vpop.f32.mrb[0].mxu0
        %880 = vdwg.mxu0
        %881 = vmatprep.subr.mxu0 0.0
        %882 = vmatpush1.msra.mxu0 %v647
        %883 = vmatprep.subr.mxu0 0.0
        %884 = vmatpush1.msra.mxu0 %v648
        %885 = vmatprep.subr.mxu0 0.0
        %886 = vmatpush1.msra.mxu0 %v649
        %887 = vmatprep.subr.mxu0 0.0
        %888 = vmatpush1.msra.mxu0 %v650
        %889 = vmatprep.subr.mxu0 0.0
        %890 = vmatpush1.msra.mxu0 %v651
        %891 = vmatprep.subr.mxu0 0.0
        %892 = vmatpush1.msra.mxu0 %v652
        %893 = vmatprep.subr.mxu0 0.0
        %894 = vmatpush1.msra.mxu0 %v653
        %895 = vmatprep.subr.mxu0 0.0
        %896 = vmatpush1.msra.mxu0 %v654
        %897 = vmatprep.subr.mxu0 0.0
        %898 = vmatpush1.msra.mxu0 %v655
        %899 = vmatprep.subr.mxu0 0.0
        %900 = vmatpush1.msra.mxu0 %v656
        %901 = vmatprep.subr.mxu0 0.0
        %902 = vmatpush1.msra.mxu0 %v657
        %903 = vmatprep.subr.mxu0 0.0
        %904 = vmatpush1.msra.mxu0 %v658
        %905 = vmatprep.subr.mxu0 0.0
        %906 = vmatpush1.msra.mxu0 %v659
        %907 = vmatprep.subr.mxu0 0.0
        %908 = vmatpush1.msra.mxu0 %v660
        %909 = vmatprep.subr.mxu0 0.0
        %910 = vmatpush1.msra.mxu0 %v661
        %911 = vmatprep.subr.mxu0 0.0
        %912 = vmatpush1.msra.mxu0 %v662
        %913 = vmatprep.subr.mxu0 0.0
        %914 = vmatpush1.msra.mxu0 %v663
        %915 = vmatprep.subr.mxu0 0.0
        %916 = vmatpush1.msra.mxu0 %v664
        %917 = vmatprep.subr.mxu0 0.0
        %918 = vmatpush1.msra.mxu0 %v665
        %919 = vmatprep.subr.mxu0 0.0
        %920 = vmatpush1.msra.mxu0 %v666
        %921 = vmatprep.subr.mxu0 0.0
        %922 = vmatpush1.msra.mxu0 %v667
        %923 = vmatprep.subr.mxu0 0.0
        %924 = vmatpush1.msra.mxu0 %v668
        %925 = vmatprep.subr.mxu0 0.0
        %926 = vmatpush1.msra.mxu0 %v669
        %927 = vmatprep.subr.mxu0 0.0
        %928 = vmatpush1.msra.mxu0 %v670
        %929 = vmatprep.subr.mxu0 0.0
        %930 = vmatpush1.msra.mxu0 %v671
        %931 = vmatprep.subr.mxu0 0.0
        %932 = vmatpush1.msra.mxu0 %v672
        %933 = vmatprep.subr.mxu0 0.0
        %934 = vmatpush1.msra.mxu0 %v673
        %935 = vmatprep.subr.mxu0 0.0
        %936 = vmatpush1.msra.mxu0 %v674
        %937 = vmatprep.subr.mxu0 0.0
        %938 = vmatpush1.msra.mxu0 %v675
        %939 = vmatprep.subr.mxu0 0.0
        %940 = vmatpush1.msra.mxu0 %v676
        %941 = vmatprep.subr.mxu0 0.0
        %942 = vmatpush1.msra.mxu0 %v677
        %943 = vmatprep.subr.mxu0 0.0
        %944 = vmatpush1.msra.mxu0 %v678
        %945 = vmatprep.mubr.f32.mxu0 %v556
        %946 = vmatmul.mubr.f32.gmra.mrb[0].mxu0 %v555
        %v947 = vpop.f32.mrb[0].mxu0
        %v948 = vadd.f32 %v863, %v947
        %v949 = vpop.f32.mrb[0].mxu0
        %950 = vmatprep.mubr.f32.mxu0 %v564
        %951 = vmatmul.mubr.f32.gmra.mrb[0].mxu0 %v563
        %v952 = vpop.f32.mrb[0].mxu0
        %v953 = vadd.f32 %v868, %v952
        %v954 = vpop.f32.mrb[0].mxu0
        %955 = vmatprep.mubr.f32.mxu0 %v572
        %956 = vmatmul.mubr.f32.gmra.mrb[0].mxu0 %v571
        %v957 = vpop.f32.mrb[0].mxu0
        %v958 = vadd.f32 %v873, %v957
        %v959 = vpop.f32.mrb[0].mxu0
        %960 = vmatprep.mubr.f32.mxu0 %v580
        %961 = vmatmul.mubr.f32.gmra.mrb[0].mxu0 %v579
        %v962 = vpop.f32.mrb[0].mxu0
        %v963 = vadd.f32 %v878, %v962
        %v964 = vpop.f32.mrb[0].mxu0
        %965 = vdwg.mxu0
        %966 = vmatprep.subr.mxu0 0.0
        %967 = vmatpush1.msra.mxu0 %v679
        %968 = vmatprep.subr.mxu0 0.0
        %969 = vmatpush1.msra.mxu0 %v680
        %970 = vmatprep.subr.mxu0 0.0
        %971 = vmatpush1.msra.mxu0 %v681
        %972 = vmatprep.subr.mxu0 0.0
        %973 = vmatpush1.msra.mxu0 %v682
        %974 = vmatprep.subr.mxu0 0.0
        %975 = vmatpush1.msra.mxu0 %v683
        %976 = vmatprep.subr.mxu0 0.0
        %977 = vmatpush1.msra.mxu0 %v684
        %978 = vmatprep.subr.mxu0 0.0
        %979 = vmatpush1.msra.mxu0 %v685
        %980 = vmatprep.subr.mxu0 0.0
        %981 = vmatpush1.msra.mxu0 %v686
        %982 = vmatprep.subr.mxu0 0.0
        %983 = vmatpush1.msra.mxu0 %v687
        %984 = vmatprep.subr.mxu0 0.0
        %985 = vmatpush1.msra.mxu0 %v688
        %986 = vmatprep.subr.mxu0 0.0
        %987 = vmatpush1.msra.mxu0 %v689
        %988 = vmatprep.subr.mxu0 0.0
        %989 = vmatpush1.msra.mxu0 %v690
        %990 = vmatprep.subr.mxu0 0.0
        %991 = vmatpush1.msra.mxu0 %v691
        %992 = vmatprep.subr.mxu0 0.0
        %993 = vmatpush1.msra.mxu0 %v692
        %994 = vmatprep.subr.mxu0 0.0
        %995 = vmatpush1.msra.mxu0 %v693
        %996 = vmatprep.subr.mxu0 0.0
        %997 = vmatpush1.msra.mxu0 %v694
        %998 = vmatprep.subr.mxu0 0.0
        %999 = vmatpush1.msra.mxu0 %v695
        %1000 = vmatprep.subr.mxu0 0.0
        %1001 = vmatpush1.msra.mxu0 %v696
        %1002 = vmatprep.subr.mxu0 0.0
        %1003 = vmatpush1.msra.mxu0 %v697
        %1004 = vmatprep.subr.mxu0 0.0
        %1005 = vmatpush1.msra.mxu0 %v698
        %1006 = vmatprep.subr.mxu0 0.0
        %1007 = vmatpush1.msra.mxu0 %v699
        %1008 = vmatprep.subr.mxu0 0.0
        %1009 = vmatpush1.msra.mxu0 %v700
        %1010 = vmatprep.subr.mxu0 0.0
        %1011 = vmatpush1.msra.mxu0 %v701
        %1012 = vmatprep.subr.mxu0 0.0
        %1013 = vmatpush1.msra.mxu0 %v702
        %1014 = vmatprep.subr.mxu0 0.0
        %1015 = vmatpush1.msra.mxu0 %v703
        %1016 = vmatprep.subr.mxu0 0.0
        %1017 = vmatpush1.msra.mxu0 %v704
        %1018 = vmatprep.subr.mxu0 0.0
        %1019 = vmatpush1.msra.mxu0 %v705
        %1020 = vmatprep.subr.mxu0 0.0
        %1021 = vmatpush1.msra.mxu0 %v706
        %1022 = vmatprep.subr.mxu0 0.0
        %1023 = vmatpush1.msra.mxu0 %v707
        %1024 = vmatprep.subr.mxu0 0.0
        %1025 = vmatpush1.msra.mxu0 %v708
        %1026 = vmatprep.subr.mxu0 0.0
        %1027 = vmatpush1.msra.mxu0 %v709
        %1028 = vmatprep.subr.mxu0 0.0
        %1029 = vmatpush1.msra.mxu0 %v710
        %1030 = vmatprep.mubr.f32.mxu0 %v558
        %1031 = vmatmul.mubr.f32.gmra.mrb[0].mxu0 %v557
        %v1032 = vpop.f32.mrb[0].mxu0
        %v1033 = vadd.f32 %v948, %v1032
        %v1034 = vpop.f32.mrb[0].mxu0
        %1035 = vmatprep.mubr.f32.mxu0 %v566
        %1036 = vmatmul.mubr.f32.gmra.mrb[0].mxu0 %v565
        %v1037 = vpop.f32.mrb[0].mxu0
        %v1038 = vadd.f32 %v953, %v1037
        %v1039 = vpop.f32.mrb[0].mxu0
        %1040 = vmatprep.mubr.f32.mxu0 %v574
        %1041 = vmatmul.mubr.f32.gmra.mrb[0].mxu0 %v573
        %v1042 = vpop.f32.mrb[0].mxu0
        %v1043 = vadd.f32 %v958, %v1042
        %v1044 = vpop.f32.mrb[0].mxu0
        %1045 = vmatprep.mubr.f32.mxu0 %v582
        %1046 = vmatmul.mubr.f32.gmra.mrb[0].mxu0 %v581
        %v1047 = vpop.f32.mrb[0].mxu0
        %v1048 = vadd.f32 %v963, %v1047
        %v1049 = vpop.f32.mrb[0].mxu0
        %1050 = vdwg.mxu0
        %v1051 = vld [vmem:[%s6] sm:$0xff]
        %v1052 = vld [vmem:[%s6 + $0x8] sm:$0xff]
        %v1053 = vld [vmem:[%s6 + $0x10] sm:$0xff]
        %v1054 = vld [vmem:[%s6 + $0x18] sm:$0xff]
        %1056 = vset.pattern.permute.xlu0 0
        %1057 = vperm.xlu0 %1056, %v1051
        %v1058 = vpop.permute.xlu0 %1057
        %1061 = vset.pattern.permute.xlu0 0
        %1062 = vperm.xlu0 %1061, %v1052
        %v1063 = vpop.permute.xlu0 %1062
        %1066 = vset.pattern.permute.xlu0 0
        %1067 = vperm.xlu0 %1066, %v1053
        %v1068 = vpop.permute.xlu0 %1067
        %1071 = vset.pattern.permute.xlu0 0
        %1072 = vperm.xlu0 %1071, %v1054
        %v1073 = vpop.permute.xlu0 %1072
        %v1075 = vmul.f32 %v1033, %v1058
        %v1076 = vmul.f32 %v1038, %v1063
        %v1077 = vmul.f32 %v1043, %v1068
        %v1078 = vmul.f32 %v1048, %v1073
        %v1079 = vld [vmem:[%s7] sm:$0xff]
        %v1080 = vld [vmem:[%s7 + $0x8] sm:$0xff]
        %v1081 = vld [vmem:[%s7 + $0x10] sm:$0xff]
        %v1082 = vld [vmem:[%s7 + $0x18] sm:$0xff]
        %1084 = vset.pattern.permute.xlu0 0
        %1085 = vperm.xlu0 %1084, %v1079
        %v1086 = vpop.permute.xlu0 %1085
        %1089 = vset.pattern.permute.xlu0 0
        %1090 = vperm.xlu0 %1089, %v1080
        %v1091 = vpop.permute.xlu0 %1090
        %1094 = vset.pattern.permute.xlu0 0
        %1095 = vperm.xlu0 %1094, %v1081
        %v1096 = vpop.permute.xlu0 %1095
        %1099 = vset.pattern.permute.xlu0 0
        %1100 = vperm.xlu0 %1099, %v1082
        %v1101 = vpop.permute.xlu0 %1100
        %v1103 = vadd.f32 %v1075, %v1086
        %v1104 = vadd.f32 %v1076, %v1091
        %v1105 = vadd.f32 %v1077, %v1096
        %v1106 = vadd.f32 %v1078, %v1101
        %v1107 = vld [vmem:[%s425] sm:$0xff]
        %v1108 = vld [vmem:[%s425 + $0x8] sm:$0xff]
        %v1109 = vld [vmem:[%s425 + $0x10] sm:$0xff]
        %v1110 = vld [vmem:[%s425 + $0x18] sm:$0xff]
        %v1111 = vmul.f32 %v1103, %v1107
        %v1112 = vmul.f32 %v1104, %v1108
        %v1113 = vmul.f32 %v1105, %v1109
        %v1114 = vmul.f32 %v1106, %v1110
        %v1115 = vadd.f32 %v1111, %v1112
        %v1116 = vadd.f32 %v1115, %v1113
        %v1117 = vadd.f32 %v1116, %v1114
        %v1118 = vrot.slane %v1117, 4
        %v1119 = vadd.f32 %v1117, %v1118
        %v1120 = vrot.slane %v1119, 2
        %v1121 = vadd.f32 %v1119, %v1120
        %v1122 = vrot.slane %v1121, 1
        %v1123 = vadd.f32 %v1121, %v1122
        %v1124 = vxor.u32 %v1123, 2147483648
        %v1125 = vmul.f32 %v1124, 1.442695
        %v1126 = vpow.pop %v1125
        %v1127 = vadd.f32 %v1126, 1.0
        %v1128 = vrcp.pop %v1127
        %v1129 = vmul.f32 1.0, %v1128
        %1130 = vst [vmem:[%s468] sm:$0x1] %v1129
        %s1131 = sand.u32 %s217, 1
        %s1132 = scalar_lea.sflag [#allocation7], %s1131
        %s1133 = sand.u32 %s217, 1
        %s1134 = scalar_lea.vmem [#allocation10], %s1133
        // Predicated region
        $region144: #{tpu_custom_call.1} parent=119 // pred_check
          %p1135 = pneg %p227
        $region145: #{tpu_custom_call.1} parent=119 // pred_check_branch
          %1137 = sbr.rel (%p1135) target = $region147
        $region146: #{tpu_custom_call.1} parent=119 // pred_region
          %s1139 = ssub.s32 16, 16
          %1140 = vsyncadd %s1132, %s1139
          %s1141 = smul.addr %s26, 16
          %s1142 = scalar_lea.hbm %s8, %s1141
          %s1144 = sshll.u32 %s1134, 4
          %s1145 = int_to_ptr.vmem [resolvable:$true] %s1144
          %1147 = dma.vmem_to_hbm [thread:$0]  %s1145, 16, %s1142, %s1132
        $region147: #{tpu_custom_call.1} parent=119 // pred_fallthru
          _
      $region120: #{tpu_custom_call.1} parent=5 // pred_fallthru
        _
      %p1148 = scmp.le.s32.totalorder 2, %s21
      // Predicated region
      $region148: #{tpu_custom_call.1} parent=5 // pred_check
        %p1149 = pneg %p1148
      $region149: #{tpu_custom_call.1} parent=5 // pred_check_branch
        %1151 = sbr.rel (%p1149) target = $region151
      $region150: #{tpu_custom_call.1} parent=5 // pred_region
        %s1152 = ssub.s32 %s21, 2
        // Predicated region
        $region152: #{tpu_custom_call.1} parent=150 // pred_check
          %p1153 = pneg %p233
        $region153: #{tpu_custom_call.1} parent=150 // pred_check_branch
          %1155 = sbr.rel (%p1153) target = $region155
        $region154: #{tpu_custom_call.1} parent=150 // pred_region
          %s1156 = sand.u32 %s218, 1
          %s1157 = scalar_lea.sflag [#allocation7], %s1156
          %s1158 = sand.u32 %s218, 1
          %s1159 = scalar_lea.vmem [#allocation10], %s1158
          %1160 = dma.done %s1157, 16
        $region155: #{tpu_custom_call.1} parent=150 // pred_fallthru
          _
      $region151: #{tpu_custom_call.1} parent=5 // pred_fallthru
        _
    $region6: #{tpu_custom_call.1} parent=1 // loop_footer
      %s25 = sadd.s32 1, %s21
    $region7: #{tpu_custom_call.1} parent=1 // loop_footer_branch
      %20 = sbr.rel target = $region3
    $region8: #{tpu_custom_call.1} parent=1 // loop_exit
      _
    %1161 = vsyncpa [#allocation6], 1
    %s1162 = scalar_lea.sflag [#allocation6], 1
    %1163 = vsyncpa %s1162, 1
    %1164 = vsyncpa [#allocation9], 1
    %1165 = vsyncpa [#allocation7], 1
    %s1166 = scalar_lea.sflag [#allocation7], 1
    %1167 = vsyncpa %s1166, 1

</llo_original>
